<compile_context>
chip_gen: v7x
topology: tpu7x:2x2x1
jax: 0.10.0
libtpu: 0.0.40
codegen_flags: <defaults>
</compile_context>

<pallas_src>
import jax
import jax.numpy as jnp
from jax.experimental import pallas as pl
from jax.experimental.pallas import tpu as pltpu


_NEG_BIAS = -1.0e30   # finite "-inf": exp() underflows to exactly 0, no NaNs
_M_INIT = -3.0e38     # online-softmax running-max init (finite, avoids inf - inf)


def _attn_pool_body(x, w_ref, bias, o_ref, m_ref, l_ref, acc_ref):
    """One online-softmax attention-pooling step on a (TB, TS, H) tile."""
    si = pl.program_id(1)

    @pl.when(si == 0)
    def _init():
        m_ref[...] = jnp.full_like(m_ref, _M_INIT)
        l_ref[...] = jnp.zeros_like(l_ref)
        acc_ref[...] = jnp.zeros_like(acc_ref)

    w = w_ref[...].astype(jnp.float32).reshape(1, 1, -1)          # (1, 1, H)
    # Linear(hidden, 1, bias=False): broadcast-mul (VPU) + reduce over H.
    # Scores kept lane-dense as (TB, TS): sequence lives on the 128-wide lane axis.
    s = jnp.sum(x * w, axis=-1)                                   # (TB, TS) f32
    if bias is not None:
        s = s + bias                                              # (TB, TS)

    m_prev = m_ref[...]                                           # (TB, 1)
    m_new = jnp.maximum(m_prev, jnp.max(s, axis=-1, keepdims=True))
    corr = jnp.exp(m_prev - m_new)                                # (TB, 1)
    p = jnp.exp(s - m_new)                                        # (TB, TS)
    l_ref[...] = corr * l_ref[...] + jnp.sum(p, axis=-1, keepdims=True)
    acc_ref[...] = corr * acc_ref[...] + jnp.sum(x * p[:, :, None], axis=1)
    m_ref[...] = m_new

    @pl.when(si == pl.num_programs(1) - 1)
    def _finalize():
        # Exact divide: the denominator is only (TB, 1), and the approximate
        # reciprocal is what broke the 1e-3 tolerance previously.
        o_ref[...] = (acc_ref[...] / l_ref[...]).astype(o_ref.dtype)


def _attn_kernel(x_ref, w_ref, o_ref, m_ref, l_ref, acc_ref):
    _attn_pool_body(x_ref[...], w_ref, None, o_ref, m_ref, l_ref, acc_ref)


def _attn_kernel_masked(x_ref, w_ref, mask_ref, o_ref, m_ref, l_ref, acc_ref):
    # Finite large-negative additive bias applied directly on the lane-dense
    # (TB, TS) layout (masked positions get alpha == 0 exactly).
    bias = jnp.where(mask_ref[...] == 0, jnp.float32(_NEG_BIAS), jnp.float32(0.0))
    _attn_pool_body(x_ref[...], w_ref, bias, o_ref, m_ref, l_ref, acc_ref)


def _physical_vmem_bytes():
    try:
        return int(pltpu.get_tpu_info().vmem_capacity_bytes)
    except Exception:
        return 64 * 1024 * 1024   # assume the smallest per-core VMEM (v7x)


def _choose_tiles(B, S, H, itemsize):
    """Pick (TB, TS): ~2 MiB x-blocks, (8,128)-legal, >=2 parallel steps when B allows."""
    budget = 2 * 1024 * 1024
    # Sequence tiling (online softmax) only when a full-S block would be too big.
    TS = S
    if 8 * S * H * itemsize > budget:
        for cand in (4096, 2048, 1024, 512, 256, 128):
            if S % cand == 0 and 8 * cand * H * itemsize <= budget:
                TS = cand
                break
        else:
            for cand in (128, 256, 512, 1024, 2048, 4096):
                if S % cand == 0:
                    TS = cand
                    break
    # Batch tiling.
    tb = max(1, budget // (TS * H * itemsize))
    tb = max(8, (tb // 8) * 8)                    # sublane-aligned tiles
    if B >= 16 and tb * 2 > B:                    # >=2 parallel steps (v7x megacore)
        tb = max(8, ((B // 2) // 8) * 8)
    tb = min(tb, B)                               # tb < B  =>  tb is a multiple of 8
    return int(tb), int(TS)


def attention_pallas(x, w, mask=None, *, block_b=None, block_s=None):
    """x: (B, S, H); w: (1, H) = nn.Linear(hidden, 1, bias=False).weight;
    mask: optional (B, S), 0 = masked.  Returns (B, H)."""
    B, S, H = x.shape
    assert w.shape == (1, H), f"expected w of shape (1, {H}), got {w.shape}"
    itemsize = jnp.dtype(x.dtype).itemsize

    TB, TS = _choose_tiles(B, S, H, itemsize)
    if block_b is not None:
        TB = min(int(block_b), B)
    if block_s is not None and S % int(block_s) == 0:
        TS = int(block_s)
    num_b = pl.cdiv(B, TB)        # ragged batch tail -> partial last block (no host pad)
    num_s = S // TS

    # VMEM budget: double-buffered x block + f32 working tiles + accumulators,
    # capped at the chip's physical VMEM minus headroom (v7x: 64 MiB physical).
    blk_in = TB * TS * H * itemsize
    f32_tile = TB * TS * H * 4
    need = 2 * blk_in + 3 * f32_tile + 4 * TB * (H + TS + 2) * 4 + (1 << 20)
    cap = _physical_vmem_bytes() - 8 * 1024 * 1024
    vmem_limit = int(max(16 * 1024 * 1024, min(cap, max(need, 32 * 1024 * 1024))))

    cost = pl.CostEstimate(
        flops=4 * B * S * H,
        transcendentals=B * S,
        bytes_accessed=(B * S * H + B * H) * itemsize + H * 4
        + (B * S * 4 if mask is not None else 0),
    )
    cparams = pltpu.CompilerParams(
        dimension_semantics=("parallel", "arbitrary"),
        vmem_limit_bytes=vmem_limit,
    )

    out_shape = jax.ShapeDtypeStruct((B, H), x.dtype)
    x_spec = pl.BlockSpec((TB, TS, H), lambda b, s: (b, s, 0))
    w_spec = pl.BlockSpec((1, H), lambda b, s: (0, 0))
    o_spec = pl.BlockSpec((TB, H), lambda b, s: (b, 0))   # resident across the S axis
    scratch = [
        pltpu.VMEM((TB, 1), jnp.float32),   # running max
        pltpu.VMEM((TB, 1), jnp.float32),   # running denominator
        pltpu.VMEM((TB, H), jnp.float32),   # running weighted sum
    ]

    if mask is None:
        return pl.pallas_call(
            _attn_kernel,
            out_shape=out_shape,
            grid_spec=pltpu.PrefetchScalarGridSpec(
                num_scalar_prefetch=0,
                grid=(num_b, num_s),
                in_specs=[x_spec, w_spec],
                out_specs=o_spec,
                scratch_shapes=scratch,
            ),
            compiler_params=cparams,
            cost_estimate=cost,
        )(x, w)

    m_spec = pl.BlockSpec((TB, TS), lambda b, s: (b, s))
    return pl.pallas_call(
        _attn_kernel_masked,
        out_shape=out_shape,
        grid_spec=pltpu.PrefetchScalarGridSpec(
            num_scalar_prefetch=0,
            grid=(num_b, num_s),
            in_specs=[x_spec, w_spec, m_spec],
            out_specs=o_spec,
            scratch_shapes=scratch,
        ),
        compiler_params=cparams,
        cost_estimate=cost,
    )(x, w, mask.astype(jnp.int32))


def attention_ref(x, w, mask=None):
    """Pure-JAX reference (exact elementwise f32 math; intended masked_fill semantics)."""
    xf = x.astype(jnp.float32)
    wf = w.astype(jnp.float32).reshape(1, 1, -1)
    scores = jnp.sum(xf * wf, axis=-1, keepdims=True)           # (B, S, 1)
    if mask is not None:
        scores = jnp.where(mask[..., None] == 0, -jnp.inf, scores)
    alpha = jax.nn.softmax(scores, axis=1)
    return jnp.sum(xf * alpha, axis=1).astype(x.dtype)


if __name__ == "__main__":
    key = jax.random.PRNGKey(0)
    kx, kw, km, kx2, km2, kx3, kw3 = jax.random.split(key, 7)

    # Shapes implied by the module: (batch, seq, hidden) with Linear(hidden, 1).
    B, S, H = 2, 8, 32
    x = jax.random.normal(kx, (B, S, H), dtype=jnp.float32)
    bound = 1.0 / (H ** 0.5)
    w = jax.random.uniform(kw, (1, H), minval=-bound, maxval=bound, dtype=jnp.float32)

    # Unmasked path.
    out = attention_pallas(x, w)
    jax.block_until_ready(out)
    assert out.shape == (B, H)
    assert jnp.allclose(out, attention_ref(x, w), atol=1e-3, rtol=1e-3), "mismatch (no mask)"

    # Masked path (every row keeps >=1 valid position; fully-masked rows are the
    # documented finite-bias deviation from masked_fill(-inf) -> NaN).
    mask = (jax.random.uniform(km, (B, S)) > 0.3).astype(jnp.int32)
    mask = mask.at[:, 0].set(1)
    out_m = attention_pallas(x, w, mask=mask)
    jax.block_until_ready(out_m)
    assert jnp.allclose(out_m, attention_ref(x, w, mask=mask), atol=1e-3, rtol=1e-3), \
        "mismatch (masked)"

    # Ragged batch (B % TB != 0): handled via a partial last block, no host-side pad.
    B2 = 20
    x2 = jax.random.normal(kx2, (B2, S, H), dtype=jnp.float32)
    mask2 = (jax.random.uniform(km2, (B2, S)) > 0.3).astype(jnp.int32)
    mask2 = mask2.at[:, 0].set(1)
    out2 = attention_pallas(x2, w, mask=mask2)
    jax.block_until_ready(out2)
    assert jnp.allclose(out2, attention_ref(x2, w, mask=mask2), atol=1e-3, rtol=1e-3), \
        "mismatch (ragged batch)"

    # Longer sequence: exercises the online-softmax S tiling (num_s > 1).
    B3, S3, H3 = 8, 512, 256
    x3 = jax.random.normal(kx3, (B3, S3, H3), dtype=jnp.float32)
    bound3 = 1.0 / (H3 ** 0.5)
    w3 = jax.random.uniform(kw3, (1, H3), minval=-bound3, maxval=bound3, dtype=jnp.float32)
    out3 = attention_pallas(x3, w3)
    jax.block_until_ready(out3)
    assert jnp.allclose(out3, attention_ref(x3, w3), atol=1e-3, rtol=1e-3), "mismatch (long seq)"

    print("KERNEL_OK")
</pallas_src>

<mosaic_0001>
module attributes {stable_mosaic.version = 11 : i64} {
  func.func @_attn_kernel(%arg0: i32, %arg1: i32, %arg2: memref<2x8x32xf32, #tpu.memory_space<vmem>>, %arg3: memref<1x32xf32, #tpu.memory_space<vmem>>, %arg4: memref<2x32xf32, #tpu.memory_space<vmem>>, %arg5: memref<2x1xf32, #tpu.memory_space<vmem>>, %arg6: memref<2x1xf32, #tpu.memory_space<vmem>>, %arg7: memref<2x32xf32, #tpu.memory_space<vmem>>) attributes {dimension_semantics = [#tpu.dimension_semantics<parallel>, #tpu.dimension_semantics<arbitrary>], iteration_bounds = array<i64: 1, 1>, scalar_prefetch = 0 : i64, scratch_operands = 3 : i64, tpu.core_type = #tpu.core_type<tc>, window_params = [{transform_indices = @transform_0, window_bounds = array<i64: 2, 8, 32>}, {pipeline_mode = #tpu.pipeline_mode<synchronous>, transform_indices = @transform_1, window_bounds = array<i64: 1, 32>}, {transform_indices = @transform_2, window_bounds = array<i64: 2, 32>}]} {
    %c0 = arith.constant 0 : index
    %c0_0 = arith.constant 0 : index
    %c0_1 = arith.constant 0 : index
    %0 = vector.load %arg2[%c0, %c0_0, %c0_1] : memref<2x8x32xf32, #tpu.memory_space<vmem>>, vector<2x8x32xf32>
    %c0_i32 = arith.constant 0 : i32
    %1 = arith.cmpi eq, %arg1, %c0_i32 : i32
    %2 = arith.extui %1 : i1 to i32
    %c0_i32_2 = arith.constant 0 : i32
    %3 = arith.cmpi ne, %2, %c0_i32_2 : i32
    scf.if %3 {
      %cst_22 = arith.constant -3.000000e+38 : f32
      %37 = vector.broadcast %cst_22 : f32 to vector<2x1xf32>
      %c0_23 = arith.constant 0 : index
      %c0_24 = arith.constant 0 : index
      %38 = vector.load %arg5[%c0_23, %c0_24] : memref<2x1xf32, #tpu.memory_space<vmem>>, vector<2x1xf32>
      tpu.vector_store %arg5[%c0_23, %c0_24], %37 {strides = array<i32>} : memref<2x1xf32, #tpu.memory_space<vmem>>, vector<2x1xf32>,
      %cst_25 = arith.constant 0.000000e+00 : f32
      %39 = vector.broadcast %cst_25 : f32 to vector<2x1xf32>
      %c0_26 = arith.constant 0 : index
      %c0_27 = arith.constant 0 : index
      %40 = vector.load %arg6[%c0_26, %c0_27] : memref<2x1xf32, #tpu.memory_space<vmem>>, vector<2x1xf32>
      tpu.vector_store %arg6[%c0_26, %c0_27], %39 {strides = array<i32>} : memref<2x1xf32, #tpu.memory_space<vmem>>, vector<2x1xf32>,
      %cst_28 = arith.constant 0.000000e+00 : f32
      %41 = vector.broadcast %cst_28 : f32 to vector<2x32xf32>
      %c0_29 = arith.constant 0 : index
      %c0_30 = arith.constant 0 : index
      %42 = vector.load %arg7[%c0_29, %c0_30] : memref<2x32xf32, #tpu.memory_space<vmem>>, vector<2x32xf32>
      tpu.vector_store %arg7[%c0_29, %c0_30], %41 {strides = array<i32>} : memref<2x32xf32, #tpu.memory_space<vmem>>, vector<2x32xf32>,
    } else {
    }
    %c0_3 = arith.constant 0 : index
    %c0_4 = arith.constant 0 : index
    %4 = vector.load %arg3[%c0_3, %c0_4] : memref<1x32xf32, #tpu.memory_space<vmem>>, vector<1x32xf32>
    %5 = vector.shape_cast %4 : vector<1x32xf32> to vector<1x1x32xf32>
    %6 = vector.broadcast %5 : vector<1x1x32xf32> to vector<2x8x32xf32>
    %7 = arith.mulf %0, %6 : vector<2x8x32xf32>
    %cst = arith.constant dense<0.000000e+00> : vector<2x8xf32>
    %8 = vector.multi_reduction <add>, %7, %cst [2] : vector<2x8x32xf32> to vector<2x8xf32>
    %c0_5 = arith.constant 0 : index
    %c0_6 = arith.constant 0 : index
    %9 = vector.load %arg5[%c0_5, %c0_6] : memref<2x1xf32, #tpu.memory_space<vmem>>, vector<2x1xf32>
    %cst_7 = arith.constant dense<0xFF800000> : vector<2xf32>
    %10 = vector.multi_reduction <maximumf>, %8, %cst_7 [1] : vector<2x8xf32> to vector<2xf32>
    %11 = vector.shape_cast %10 : vector<2xf32> to vector<2x1xf32>
    %12 = arith.maximumf %9, %11 : vector<2x1xf32>
    %13 = arith.subf %9, %12 : vector<2x1xf32>
    %14 = math.exp %13 : vector<2x1xf32>
    %15 = vector.broadcast %12 : vector<2x1xf32> to vector<2x8xf32>
    %16 = arith.subf %8, %15 : vector<2x8xf32>
    %17 = math.exp %16 : vector<2x8xf32>
    %c0_8 = arith.constant 0 : index
    %c0_9 = arith.constant 0 : index
    %18 = vector.load %arg6[%c0_8, %c0_9] : memref<2x1xf32, #tpu.memory_space<vmem>>, vector<2x1xf32>
    %19 = arith.mulf %14, %18 : vector<2x1xf32>
    %cst_10 = arith.constant dense<0.000000e+00> : vector<2xf32>
    %20 = vector.multi_reduction <add>, %17, %cst_10 [1] : vector<2x8xf32> to vector<2xf32>
    %21 = vector.shape_cast %20 : vector<2xf32> to vector<2x1xf32>
    %22 = arith.addf %19, %21 : vector<2x1xf32>
    %c0_11 = arith.constant 0 : index
    %c0_12 = arith.constant 0 : index
    %23 = vector.load %arg6[%c0_11, %c0_12] : memref<2x1xf32, #tpu.memory_space<vmem>>, vector<2x1xf32>
    tpu.vector_store %arg6[%c0_11, %c0_12], %22 {strides = array<i32>} : memref<2x1xf32, #tpu.memory_space<vmem>>, vector<2x1xf32>,
    %c0_13 = arith.constant 0 : index
    %c0_14 = arith.constant 0 : index
    %24 = vector.load %arg7[%c0_13, %c0_14] : memref<2x32xf32, #tpu.memory_space<vmem>>, vector<2x32xf32>
    %25 = vector.broadcast %14 : vector<2x1xf32> to vector<2x32xf32>
    %26 = arith.mulf %25, %24 : vector<2x32xf32>
    %27 = vector.shape_cast %17 : vector<2x8xf32> to vector<2x8x1xf32>
    %28 = vector.broadcast %27 : vector<2x8x1xf32> to vector<2x8x32xf32>
    %29 = arith.mulf %0, %28 : vector<2x8x32xf32>
    %cst_15 = arith.constant dense<0.000000e+00> : vector<2x32xf32>
    %30 = vector.multi_reduction <add>, %29, %cst_15 [1] : vector<2x8x32xf32> to vector<2x32xf32>
    %31 = arith.addf %26, %30 : vector<2x32xf32>
    %c0_16 = arith.constant 0 : index
    %c0_17 = arith.constant 0 : index
    %32 = vector.load %arg7[%c0_16, %c0_17] : memref<2x32xf32, #tpu.memory_space<vmem>>, vector<2x32xf32>
    tpu.vector_store %arg7[%c0_16, %c0_17], %31 {strides = array<i32>} : memref<2x32xf32, #tpu.memory_space<vmem>>, vector<2x32xf32>,
    %c0_18 = arith.constant 0 : index
    %c0_19 = arith.constant 0 : index
    %33 = vector.load %arg5[%c0_18, %c0_19] : memref<2x1xf32, #tpu.memory_space<vmem>>, vector<2x1xf32>
    tpu.vector_store %arg5[%c0_18, %c0_19], %12 {strides = array<i32>} : memref<2x1xf32, #tpu.memory_space<vmem>>, vector<2x1xf32>,
    %c0_i32_20 = arith.constant 0 : i32
    %34 = arith.cmpi eq, %arg1, %c0_i32_20 : i32
    %35 = arith.extui %34 : i1 to i32
    %c0_i32_21 = arith.constant 0 : i32
    %36 = arith.cmpi ne, %35, %c0_i32_21 : i32
    scf.if %36 {
      %c0_22 = arith.constant 0 : index
      %c0_23 = arith.constant 0 : index
      %37 = vector.load %arg7[%c0_22, %c0_23] : memref<2x32xf32, #tpu.memory_space<vmem>>, vector<2x32xf32>
      %c0_24 = arith.constant 0 : index
      %c0_25 = arith.constant 0 : index
      %38 = vector.load %arg6[%c0_24, %c0_25] : memref<2x1xf32, #tpu.memory_space<vmem>>, vector<2x1xf32>
      %39 = vector.broadcast %38 : vector<2x1xf32> to vector<2x32xf32>
      %40 = arith.divf %37, %39 : vector<2x32xf32>
      %c0_26 = arith.constant 0 : index
      %c0_27 = arith.constant 0 : index
      %41 = vector.load %arg4[%c0_26, %c0_27] : memref<2x32xf32, #tpu.memory_space<vmem>>, vector<2x32xf32>
      tpu.vector_store %arg4[%c0_26, %c0_27], %40 {strides = array<i32>} : memref<2x32xf32, #tpu.memory_space<vmem>>, vector<2x32xf32>,
    } else {
    }
    return
  }
  func.func @transform_0(%arg0: i32, %arg1: i32) -> (i32, i32, i32) {
    %c0_i32 = arith.constant 0 : i32
    %c0_i32_0 = arith.constant 0 : i32
    return %arg0, %arg1, %c0_i32 : i32, i32, i32
  }
  func.func @transform_1(%arg0: i32, %arg1: i32) -> (i32, i32) {
    %c0_i32 = arith.constant 0 : i32
    %c0_i32_0 = arith.constant 0 : i32
    %c0_i32_1 = arith.constant 0 : i32
    return %c0_i32, %c0_i32_0 : i32, i32
  }
  func.func @transform_2(%arg0: i32, %arg1: i32) -> (i32, i32) {
    %c0_i32 = arith.constant 0 : i32
    %c0_i32_0 = arith.constant 0 : i32
    return %arg0, %c0_i32 : i32, i32
  }
}

</mosaic_0001>

<llo_original>
// kernel: tpu_custom_call.1
$region0: #{tpu_custom_call.1}
  #allocation0 [shape = 'u32[]', space=smem, size = 0x4, offset = 0x4, fixed_abs, tag = 'smem constant byte address 0x4 - core index']
  #allocation1 [shape = 'u32[144,128]{1,0:T(1,128)}', space=vmem, size = 0x12000, scoped, tag = 'internal scratch']
  #allocation2 [shape = 'f32[2,1]{1,0:T(2,128)}', space=vmem, size = 0x400, scoped, tag = 'scratch operand']
  #allocation3 [shape = 'f32[2,1]{1,0:T(2,128)}', space=vmem, size = 0x400, scoped, tag = 'scratch operand']
  #allocation4 [shape = 'f32[2,32]{1,0:T(2,128)}', space=vmem, size = 0x400, scoped, tag = 'scratch operand']
  %s0 = inlined_call_operand.hbm [shape: f32[2,8,32], index: 0, kind: input, shape index: {}]
  %s1 = inlined_call_operand.vmem [shape: f32[1,32], index: 1, kind: input, shape index: {}]
  %s2 = inlined_call_operand.hbm [shape: f32[2,32], index: 2, kind: output, shape index: {}]
  %s3 = sld [smem:[#allocation0]]
  $region30: #{tpu_custom_call.1} parent=0
    _
  %s5 = ssub.s32 1, %s3
  %s6 = scalar_select 0, %s5, %s3
  $region1: #{tpu_custom_call.1} parent=0
    #allocation5 [shape = 'u8[8192]{0}', space=vmem, size = 0x2000, scoped, tag = 'input window, operand 0, single buffered']
    #allocation6 [shape = 's32[1]{0}', space=sflag, size = 0x4, scoped, tag = 'scoped memory for tpu_custom_call.1']
    #allocation7 [shape = 's32[1]{0}', space=sflag, size = 0x4, scoped, tag = 'scoped memory for tpu_custom_call.1']
    #allocation8 [shape = 'u8[1024]{0}', space=vmem, size = 0x400, scoped, tag = 'output window, operand 0, single buffered']
    %7 = vsyncpa [#allocation6], 0
    %8 = vsyncpa [#allocation7], 0
    // Predicated region
    $region2: #{tpu_custom_call.1} parent=1 // pred_check
      _
    $region3: #{tpu_custom_call.1} parent=1 // pred_check_branch
      %10 = sbr.rel (0) target = $region5
    $region4: #{tpu_custom_call.1} parent=1 // pred_region
      %s12 = ssub.s32 256, 256
      %13 = vsyncadd [#allocation6], %s12
      %s14 = sshll.u32 [#allocation5], 4
      %s15 = int_to_ptr.vmem [resolvable:$true] %s14
      %20 = dma.hbm_to_vmem [thread:$0]  %s0, 256, %s15, [#allocation6], 128, 128, 8
    $region5: #{tpu_custom_call.1} parent=1 // pred_fallthru
      _
    // Predicated region
    $region6: #{tpu_custom_call.1} parent=1 // pred_check
      _
    $region7: #{tpu_custom_call.1} parent=1 // pred_check_branch
      %22 = sbr.rel (0) target = $region9
    $region8: #{tpu_custom_call.1} parent=1 // pred_region
      _
    $region9: #{tpu_custom_call.1} parent=1 // pred_fallthru
      _
    // Predicated region
    $region10: #{tpu_custom_call.1} parent=1 // pred_check
      _
    $region11: #{tpu_custom_call.1} parent=1 // pred_check_branch
      %24 = sbr.rel (0) target = $region13
    $region12: #{tpu_custom_call.1} parent=1 // pred_region
      %25 = dma.done [#allocation6], 256
    $region13: #{tpu_custom_call.1} parent=1 // pred_fallthru
      _
    %v26 = vld [vmem:[#allocation5] sm:$0xff]
    %v27 = vld [vmem:[#allocation5 + $0x8] sm:$0xff]
    %p28 = scmp.eq.s32.totalorder 0, 0
    // Predicated region
    $region14: #{tpu_custom_call.1} parent=1 // pred_check
      %p29 = pneg %p28
    $region15: #{tpu_custom_call.1} parent=1 // pred_check_branch
      %31 = sbr.rel (%p29) target = $region17
    $region16: #{tpu_custom_call.1} parent=1 // pred_region
      %vm32 = vcmask 1024
      %33 = vst.msk [vmem:[#allocation2] sm:$0x3] %vm32, -3e+38
      %34 = vst.msk [vmem:[#allocation3] sm:$0x3] %vm32, 0.0
      %vm35 = vcmask 254976
      %36 = vst.msk [vmem:[#allocation4] sm:$0x3] %vm35, 0.0
    $region17: #{tpu_custom_call.1} parent=1 // pred_fallthru
      _
    %v37 = vld [vmem:[%s1] sm:$0x1]
    %v39 = vlaneseq
    %v40 = vshrl.u32 %v39, 7
    %v41 = vsub.s32 0, %v40
    %v42 = vrot.slane %v37, %v41
    %v44 = vmul.f32 %v26, %v42
    %v45 = vmul.f32 %v27, %v42
    %vm46 = vcmask 261120
    %v47 = vsel %vm46, %v44, 0.0
    %48 = vadd.xlane.f32.xlu0 %v47
    %v49 = vpop.xlane.xlu0 %48
    %v50 = vsel %vm46, %v45, 0.0
    %51 = vadd.xlane.f32.xlu0 %v50
    %v52 = vpop.xlane.xlu0 %51
    %v53 = vld [vmem:[#allocation2] sm:$0x3]
    %v56 = vlaneseq
    %v57 = vand.u32 %v56, 127
    %v58 = vlaneseq
    %v59 = vshrl.u32 %v58, 7
    %v60 = vsub.s32 %v57, %v59
    %v61 = vrot.slane %v49, %v60
    %v62 = vlaneseq
    %v63 = vshrl.u32 %v62, 7
    %v64 = vsub.s32 %v57, %v63
    %v65 = vrot.slane %v52, %v64
    %vm66 = vcmask 1041409
    %v67 = vsel %vm66, %v65, %v61
    %vm69 = vcmask 58368
    %v70 = vsel %vm69, %v67, -inf
    %71 = vmax.xlane.f32.xlu0 %v70
    %v72 = vpop.xlane.xlu0 %71
    %v73 = vmax.f32 %v53, %v72
    %v74 = vsub.f32 %v53, %v73
    %v75 = vmul.f32 %v74, 1.442695
    %v76 = vpow.pop %v75
    %78 = vset.pattern.permute.xlu0 0
    %79 = vperm.xlu0 %78, %v73
    %v80 = vpop.permute.xlu0 %79
    %v81 = vlaneseq
    %v82 = vshrl.u32 %v81, 7
    %v83 = vsub.s32 0, %v82
    %v84 = vrot.slane %v80, %v83
    %v85 = vlaneseq
    %v86 = vshrl.u32 %v85, 7
    %v87 = vsub.s32 1, %v86
    %v88 = vrot.slane %v80, %v87
    %v91 = vsub.f32 %v49, %v84
    %v92 = vsub.f32 %v52, %v88
    %v93 = vmul.f32 %v91, 1.442695
    %v94 = vpow.pop %v93
    %v95 = vmul.f32 %v92, 1.442695
    %v96 = vpow.pop %v95
    %v97 = vld [vmem:[#allocation3] sm:$0x3]
    %v98 = vmul.f32 %v76, %v97
    %101 = vset.pattern.permute.xlu0 0
    %102 = vperm.xlu0 %101, %v94
    %v103 = vpop.permute.xlu0 %102
    %104 = vset.pattern.permute.xlu0 0
    %105 = vperm.xlu0 %104, %v96
    %v106 = vpop.permute.xlu0 %105
    %v107 = vlaneseq
    %v108 = vshrl.u32 %v107, 7
    %v109 = vsub.s32 %v57, %v108
    %v110 = vrot.slane %v103, %v109
    %v111 = vlaneseq
    %v112 = vshrl.u32 %v111, 7
    %v113 = vsub.s32 %v57, %v112
    %v114 = vrot.slane %v106, %v113
    %v115 = vsel %vm66, %v114, %v110
    %v117 = vsel %vm69, %v115, 0.0
    %118 = vadd.xlane.f32.xlu0 %v117
    %v119 = vpop.xlane.xlu0 %118
    %v120 = vadd.f32 %v98, %v119
    %vm121 = vcmask 1024
    %122 = vst.msk [vmem:[#allocation3] sm:$0x3] %vm121, %v120
    %v123 = vld [vmem:[#allocation4] sm:$0x3]
    %125 = vset.pattern.permute.xlu0 0
    %126 = vperm.xlu0 %125, %v76
    %v127 = vpop.permute.xlu0 %126
    %v129 = vmul.f32 %v127, %v123
    %v132 = vmul.f32 %v26, %v103
    %v133 = vmul.f32 %v27, %v106
    %v134 = vsel %vm46, %v132, 0.0
    %v135 = vrot.slane %v134, 4
    %v136 = vadd.f32 %v134, %v135
    %v137 = vrot.slane %v136, 2
    %v138 = vadd.f32 %v136, %v137
    %v139 = vrot.slane %v138, 1
    %v140 = vadd.f32 %v138, %v139
    %v141 = vsel %vm46, %v133, 0.0
    %v142 = vrot.slane %v141, 4
    %v143 = vadd.f32 %v141, %v142
    %v144 = vrot.slane %v143, 2
    %v145 = vadd.f32 %v143, %v144
    %v146 = vrot.slane %v145, 1
    %v147 = vadd.f32 %v145, %v146
    %v150 = vsel %vm66, %v147, %v140
    %v152 = vadd.f32 %v129, %v150
    %vm153 = vcmask 254976
    %154 = vst.msk [vmem:[#allocation4] sm:$0x3] %vm153, %v152
    %155 = vst.msk [vmem:[#allocation2] sm:$0x3] %vm121, %v73
    // Predicated region
    $region18: #{tpu_custom_call.1} parent=1 // pred_check
      %p156 = pneg %p28
    $region19: #{tpu_custom_call.1} parent=1 // pred_check_branch
      %158 = sbr.rel (%p156) target = $region21
    $region20: #{tpu_custom_call.1} parent=1 // pred_region
      %v159 = vld [vmem:[#allocation4] sm:$0x3]
      %v160 = vld [vmem:[#allocation3] sm:$0x3]
      %162 = vset.pattern.permute.xlu0 0
      %163 = vperm.xlu0 %162, %v160
      %v164 = vpop.permute.xlu0 %163
      %v166 = vrcp.pop %v164
      %v167 = vmul.f32 %v159, %v166
      %168 = vst.msk [vmem:[#allocation8] sm:$0x3] %vm153, %v167
    $region21: #{tpu_custom_call.1} parent=1 // pred_fallthru
      _
    // Predicated region
    $region22: #{tpu_custom_call.1} parent=1 // pred_check
      _
    $region23: #{tpu_custom_call.1} parent=1 // pred_check_branch
      %170 = sbr.rel (0) target = $region25
    $region24: #{tpu_custom_call.1} parent=1 // pred_region
      %s172 = ssub.s32 32, 32
      %173 = vsyncadd [#allocation7], %s172
      %s175 = sshll.u32 [#allocation8], 4
      %s176 = int_to_ptr.vmem [resolvable:$true] %s175
      %178 = dma.vmem_to_hbm [thread:$0]  %s176, 32, %s2, [#allocation7]
    $region25: #{tpu_custom_call.1} parent=1 // pred_fallthru
      _
    // Predicated region
    $region26: #{tpu_custom_call.1} parent=1 // pred_check
      _
    $region27: #{tpu_custom_call.1} parent=1 // pred_check_branch
      %180 = sbr.rel (0) target = $region29
    $region28: #{tpu_custom_call.1} parent=1 // pred_region
      %181 = dma.done [#allocation7], 32
    $region29: #{tpu_custom_call.1} parent=1 // pred_fallthru
      _
    %182 = vsyncpa [#allocation6], 1
    %183 = vsyncpa [#allocation7], 1

</llo_original>
